<compile_context>
chip_gen: v6e
topology: v6e:2x2x1
jax: 0.10.0
libtpu: 0.0.40
codegen_flags: <defaults>
</compile_context>

<pallas_src>
import functools

import numpy as np
import jax
import jax.numpy as jnp
from jax.experimental import pallas as pl
from jax.experimental.pallas import tpu as pltpu

LOG_SCALE_MAX = 2.0
LOG_SCALE_MIN = -10.0
_HALF_LOG_2PI = 0.5 * float(np.log(2.0 * np.pi))


def _make_kernel(hid, in_features, out_features, slab_width, deterministic):
    """Builds the fused forward kernel for static shapes / mode."""
    pad = slab_width - (in_features + 2 * hid + out_features + 1)

    def kernel(*refs):
        if deterministic:
            x_ref, w_enc_ref, b_enc_ref, w_dc_ref, b_dc_ref, out_ref = refs
        else:
            x_ref, eps_ref, w_enc_ref, b_enc_ref, w_dc_ref, b_dc_ref, out_ref = refs

        x = x_ref[...]

        # --- encoder: one fused matmul for both halves (loc | log_scale) ---
        # w_enc is pre-transposed to [in, 2*hid] -> direct MXU contraction.
        z = jnp.dot(x, w_enc_ref[...],
                    preferred_element_type=jnp.float32) + b_enc_ref[...]
        loc = z[:, :hid]
        log_scale = jnp.clip(z[:, hid:], LOG_SCALE_MIN, LOG_SCALE_MAX)

        # --- reparameterized sample + log N(z_ | loc, scale) ---
        # (z_ - loc) / scale == eps exactly, so the divide disappears.
        neg_sum_ls = -jnp.sum(log_scale, axis=1, keepdims=True)
        if deterministic:
            z_ = loc
            logp = neg_sum_ls - hid * _HALF_LOG_2PI
        else:
            eps = eps_ref[...]
            scale = jnp.exp(log_scale)
            z_ = loc + scale * eps
            logp = (neg_sum_ls
                    - hid * _HALF_LOG_2PI
                    - 0.5 * jnp.sum(eps * eps, axis=1, keepdims=True))

        # --- decoder + classifier: one fused matmul (w_dc pre-transposed [hid, in+out]) ---
        dc = jnp.dot(z_, w_dc_ref[...],
                     preferred_element_type=jnp.float32) + b_dc_ref[...]
        x_rec = jax.nn.sigmoid(dc[:, :in_features])
        y_hat = dc[:, in_features:]

        # --- one lane-dense, full-width, unmasked store of the packed slab ---
        pieces = [x_rec, loc, log_scale, y_hat, logp]
        if pad:
            pieces.append(jnp.zeros((x.shape[0], pad), jnp.float32))
        out_ref[...] = jnp.concatenate(pieces, axis=1)

    return kernel


def prepare_params(params):
    """One-time repacking/transposition of the PyTorch-layout weights (OUT of per-call path)."""
    w_enc = jnp.asarray(params["w_enc"], jnp.float32).T                  # [in, 2*hid]
    b_enc = jnp.asarray(params["b_enc"], jnp.float32).reshape(1, -1)     # [1, 2*hid]
    # decoder and classifier share the same contraction dim (hid) -> fuse operands
    w_dc = jnp.concatenate([jnp.asarray(params["w_dec"], jnp.float32),   # [in,  hid]
                            jnp.asarray(params["w_clf"], jnp.float32)],  # [out, hid]
                           axis=0).T                                     # [hid, in+out]
    b_dc = jnp.concatenate([jnp.asarray(params["b_dec"], jnp.float32),
                            jnp.asarray(params["b_clf"], jnp.float32)]).reshape(1, -1)
    return dict(
        w_enc=w_enc, b_enc=b_enc, w_dc=w_dc, b_dc=b_dc,
        hid=int(w_enc.shape[1]) // 2,
        in_features=int(w_enc.shape[0]),
        out_features=int(params["w_clf"].shape[0]),
    )


@functools.partial(jax.jit, static_argnames=("hid", "out_features", "deterministic"))
def _forward_impl(x, eps, w_enc, b_enc, w_dc, b_dc, *, hid, out_features, deterministic):
    B, in_features = x.shape
    total = in_features + 2 * hid + out_features + 1
    slab_width = 128 * pl.cdiv(total, 128)          # lane-dense output slab

    # Batch tiling: 128-row tiles once the batch is big enough (v7x: 2 TCs split
    # the "parallel" axis; all gens: BlockSpec double-buffers the x/eps DMAs and
    # VMEM use stays bounded under v7x's 64 MiB). Small batches run as one tile.
    tile_b = 128 if B >= 256 else ((B + 7) // 8) * 8
    B_pad = tile_b * ((B + tile_b - 1) // tile_b)
    if B_pad != B:
        x = jnp.pad(x, ((0, B_pad - B), (0, 0)))
        if eps is not None:
            eps = jnp.pad(eps, ((0, B_pad - B), (0, 0)))
    grid = (B_pad // tile_b,)

    kernel = _make_kernel(hid, in_features, out_features, slab_width, deterministic)

    def row_spec(width):          # tiled on the batch axis
        return pl.BlockSpec((tile_b, width), lambda i: (i, 0))

    def resident(arr):            # weights/biases stay VMEM-resident across grid steps
        return pl.BlockSpec(arr.shape, lambda i: (0, 0))

    if deterministic:
        args = (x, w_enc, b_enc, w_dc, b_dc)
        in_specs = [row_spec(in_features),
                    resident(w_enc), resident(b_enc), resident(w_dc), resident(b_dc)]
        n_trans = in_features                      # sigmoid only
        eps_bytes = 0
    else:
        args = (x, eps, w_enc, b_enc, w_dc, b_dc)
        in_specs = [row_spec(in_features), row_spec(hid),
                    resident(w_enc), resident(b_enc), resident(w_dc), resident(b_dc)]
        n_trans = in_features + hid                # sigmoid + exp(log_scale)
        eps_bytes = eps.size * 4

    flops = 2 * B_pad * (in_features * 2 * hid + hid * (in_features + out_features))
    bytes_accessed = (4 * (x.size + w_enc.size + b_enc.size + w_dc.size + b_dc.size
                           + B_pad * slab_width) + eps_bytes)

    slab = pl.pallas_call(
        kernel,
        out_shape=jax.ShapeDtypeStruct((B_pad, slab_width), jnp.float32),
        grid=grid,
        in_specs=in_specs,
        out_specs=pl.BlockSpec((tile_b, slab_width), lambda i: (i, 0)),
        compiler_params=pltpu.CompilerParams(dimension_semantics=("parallel",)),
        cost_estimate=pl.CostEstimate(flops=flops,
                                      transcendentals=B_pad * n_trans,
                                      bytes_accessed=bytes_accessed),
    )(*args)

    # Slices are inside this jit, so XLA fuses them with the pad-row trim instead
    # of launching five tiny copy ops.
    c0 = 0
    x_rec = slab[:B, c0:c0 + in_features]; c0 += in_features
    loc = slab[:B, c0:c0 + hid]; c0 += hid
    log_scale = slab[:B, c0:c0 + hid]; c0 += hid
    y_hat = slab[:B, c0:c0 + out_features]; c0 += out_features
    logp = slab[:B, c0]
    return y_hat, x_rec, logp, loc, log_scale


def classify_vae_forward(x, prepared, eps=None, deterministic=False):
    """Returns (y_hat, x_, z_logprob, loc, log_scale), matching the PyTorch module."""
    if not deterministic and eps is None:
        # eps plays the role of torch.randn_like(sigma); it is supplied by the
        # caller so the kernel stays reproducible against the reference.
        # TODO(synk): production variant generating eps in-kernel via
        # pltpu.prng_seed + pltpu.stateful_normal (drops one HBM input + DMA).
        raise ValueError("pass eps with shape [B, hid] when deterministic=False")
    return _forward_impl(
        x, None if deterministic else eps,
        prepared["w_enc"], prepared["b_enc"], prepared["w_dc"], prepared["b_dc"],
        hid=prepared["hid"], out_features=prepared["out_features"],
        deterministic=deterministic)


def _reference_forward(x, params, eps=None, deterministic=False):
    """Pure-JAX mirror of the PyTorch forward for the correctness check."""
    w_enc, b_enc = params["w_enc"], params["b_enc"]
    w_dec, b_dec = params["w_dec"], params["b_dec"]
    w_clf, b_clf = params["w_clf"], params["b_clf"]
    z = x @ w_enc.T + b_enc
    hid = z.shape[1] // 2
    loc, log_scale = z[:, :hid], z[:, hid:]
    log_scale = jnp.clip(log_scale, LOG_SCALE_MIN, LOG_SCALE_MAX)
    scale = jnp.exp(log_scale)
    z_ = loc if deterministic else loc + scale * eps
    logp = jnp.sum(-jnp.log(scale) - 0.5 * np.log(2 * np.pi)
                   - 0.5 * ((z_ - loc) / scale) ** 2, axis=1)
    x_rec = jax.nn.sigmoid(z_ @ w_dec.T + b_dec)
    y_hat = z_ @ w_clf.T + b_clf
    return y_hat, x_rec, logp, loc, log_scale


if __name__ == "__main__":
    B, in_features, hid_features, out_features = 8, 64, 32, 10

    key = jax.random.PRNGKey(0)
    keys = jax.random.split(key, 8)

    def lin_init(kw, kb, fan_in, fan_out):
        bound = 1.0 / float(np.sqrt(fan_in))
        w = jax.random.uniform(kw, (fan_out, fan_in), jnp.float32, -bound, bound)
        b = jax.random.uniform(kb, (fan_out,), jnp.float32, -bound, bound)
        return w, b

    w_enc, b_enc = lin_init(keys[0], keys[1], in_features, hid_features * 2)
    w_dec, b_dec = lin_init(keys[2], keys[3], hid_features, in_features)
    w_clf, b_clf = lin_init(keys[4], keys[5], hid_features, out_features)
    params = dict(w_enc=w_enc, b_enc=b_enc, w_dec=w_dec, b_dec=b_dec,
                  w_clf=w_clf, b_clf=b_clf)
    prepared = prepare_params(params)   # one-time weight repacking / transposition

    x = jax.random.uniform(keys[6], (B, in_features), jnp.float32)
    eps = jax.random.normal(keys[7], (B, hid_features), jnp.float32)  # torch.randn_like

    # stochastic path
    outs = jax.block_until_ready(classify_vae_forward(x, prepared, eps=eps))
    refs = _reference_forward(x, params, eps=eps)
    for o, r in zip(outs, refs):
        np.testing.assert_allclose(np.asarray(o), np.asarray(r), rtol=1e-4, atol=1e-4)

    # deterministic path (no eps array allocated / DMA'd)
    outs_det = jax.block_until_ready(
        classify_vae_forward(x, prepared, deterministic=True))
    refs_det = _reference_forward(x, params, deterministic=True)
    for o, r in zip(outs_det, refs_det):
        np.testing.assert_allclose(np.asarray(o), np.asarray(r), rtol=1e-4, atol=1e-4)

    print("KERNEL_OK")
</pallas_src>

<mosaic_0001>
module attributes {stable_mosaic.version = 11 : i64} {
  func.func @kernel(%arg0: i32, %arg1: memref<8x64xf32, #tpu.memory_space<vmem>>, %arg2: memref<8x32xf32, #tpu.memory_space<vmem>>, %arg3: memref<64x64xf32, #tpu.memory_space<vmem>>, %arg4: memref<1x64xf32, #tpu.memory_space<vmem>>, %arg5: memref<32x74xf32, #tpu.memory_space<vmem>>, %arg6: memref<1x74xf32, #tpu.memory_space<vmem>>, %arg7: memref<8x256xf32, #tpu.memory_space<vmem>>) attributes {dimension_semantics = [#tpu.dimension_semantics<parallel>], iteration_bounds = array<i64: 1>, scalar_prefetch = 0 : i64, scratch_operands = 0 : i64, tpu.core_type = #tpu.core_type<tc>, window_params = [{transform_indices = @transform_0, window_bounds = array<i64: 8, 64>}, {transform_indices = @transform_1, window_bounds = array<i64: 8, 32>}, {pipeline_mode = #tpu.pipeline_mode<synchronous>, transform_indices = @transform_2, window_bounds = array<i64: 64, 64>}, {pipeline_mode = #tpu.pipeline_mode<synchronous>, transform_indices = @transform_3, window_bounds = array<i64: 1, 64>}, {pipeline_mode = #tpu.pipeline_mode<synchronous>, transform_indices = @transform_4, window_bounds = array<i64: 32, 74>}, {pipeline_mode = #tpu.pipeline_mode<synchronous>, transform_indices = @transform_5, window_bounds = array<i64: 1, 74>}, {transform_indices = @transform_6, window_bounds = array<i64: 8, 256>}]} {
    %c0 = arith.constant 0 : index
    %c0_0 = arith.constant 0 : index
    %0 = vector.load %arg1[%c0, %c0_0] : memref<8x64xf32, #tpu.memory_space<vmem>>, vector<8x64xf32>
    %c0_1 = arith.constant 0 : index
    %c0_2 = arith.constant 0 : index
    %1 = vector.load %arg3[%c0_1, %c0_2] : memref<64x64xf32, #tpu.memory_space<vmem>>, vector<64x64xf32>
    %cst = arith.constant dense<0.000000e+00> : vector<8x64xf32>
    %2 = tpu.matmul %0, %1, %cst {dimension_numbers = #tpu.dot_dimension_numbers<[1], [0], [0], [1], [0, 0, 1, 1], [], []>} : vector<8x64xf32>, vector<64x64xf32>, vector<8x64xf32> -> vector<8x64xf32>
    %c0_3 = arith.constant 0 : index
    %c0_4 = arith.constant 0 : index
    %3 = vector.load %arg4[%c0_3, %c0_4] : memref<1x64xf32, #tpu.memory_space<vmem>>, vector<1x64xf32>
    %4 = vector.broadcast %3 : vector<1x64xf32> to vector<8x64xf32>
    %5 = arith.addf %2, %4 : vector<8x64xf32>
    %6 = vector.extract_strided_slice %5 {offsets = [0, 0], sizes = [8, 32], strides = [1, 1]} : vector<8x64xf32> to vector<8x32xf32>
    %7 = vector.extract_strided_slice %5 {offsets = [0, 32], sizes = [8, 32], strides = [1, 1]} : vector<8x64xf32> to vector<8x32xf32>
    %cst_5 = arith.constant -1.000000e+01 : f32
    %cst_6 = arith.constant 2.000000e+00 : f32
    %8 = vector.broadcast %cst_5 : f32 to vector<8x32xf32>
    %9 = arith.maximumf %8, %7 : vector<8x32xf32>
    %10 = vector.broadcast %cst_6 : f32 to vector<8x32xf32>
    %11 = arith.minimumf %10, %9 : vector<8x32xf32>
    %cst_7 = arith.constant dense<0.000000e+00> : vector<8xf32>
    %12 = vector.multi_reduction <add>, %11, %cst_7 [1] : vector<8x32xf32> to vector<8xf32>
    %13 = vector.shape_cast %12 : vector<8xf32> to vector<8x1xf32>
    %cst_8 = arith.constant 0.000000e+00 : f32
    %14 = vector.broadcast %cst_8 : f32 to vector<8x1xf32>
    %15 = arith.subf %14, %13 : vector<8x1xf32>
    %c0_9 = arith.constant 0 : index
    %c0_10 = arith.constant 0 : index
    %16 = vector.load %arg2[%c0_9, %c0_10] : memref<8x32xf32, #tpu.memory_space<vmem>>, vector<8x32xf32>
    %17 = math.exp %11 : vector<8x32xf32>
    %18 = arith.mulf %17, %16 : vector<8x32xf32>
    %19 = arith.addf %6, %18 : vector<8x32xf32>
    %cst_11 = arith.constant 29.4060326 : f32
    %20 = vector.broadcast %cst_11 : f32 to vector<8x1xf32>
    %21 = arith.subf %15, %20 : vector<8x1xf32>
    %22 = arith.mulf %16, %16 : vector<8x32xf32>
    %cst_12 = arith.constant dense<0.000000e+00> : vector<8xf32>
    %23 = vector.multi_reduction <add>, %22, %cst_12 [1] : vector<8x32xf32> to vector<8xf32>
    %24 = vector.shape_cast %23 : vector<8xf32> to vector<8x1xf32>
    %cst_13 = arith.constant 5.000000e-01 : f32
    %25 = vector.broadcast %cst_13 : f32 to vector<8x1xf32>
    %26 = arith.mulf %25, %24 : vector<8x1xf32>
    %27 = arith.subf %21, %26 : vector<8x1xf32>
    %c0_14 = arith.constant 0 : index
    %c0_15 = arith.constant 0 : index
    %28 = vector.load %arg5[%c0_14, %c0_15] : memref<32x74xf32, #tpu.memory_space<vmem>>, vector<32x74xf32>
    %cst_16 = arith.constant dense<0.000000e+00> : vector<8x74xf32>
    %29 = tpu.matmul %19, %28, %cst_16 {dimension_numbers = #tpu.dot_dimension_numbers<[1], [0], [0], [1], [0, 0, 1, 1], [], []>} : vector<8x32xf32>, vector<32x74xf32>, vector<8x74xf32> -> vector<8x74xf32>
    %c0_17 = arith.constant 0 : index
    %c0_18 = arith.constant 0 : index
    %30 = vector.load %arg6[%c0_17, %c0_18] : memref<1x74xf32, #tpu.memory_space<vmem>>, vector<1x74xf32>
    %31 = vector.broadcast %30 : vector<1x74xf32> to vector<8x74xf32>
    %32 = arith.addf %29, %31 : vector<8x74xf32>
    %33 = vector.extract_strided_slice %32 {offsets = [0, 0], sizes = [8, 64], strides = [1, 1]} : vector<8x74xf32> to vector<8x64xf32>
    %34 = arith.negf %33 : vector<8x64xf32>
    %35 = math.exp %34 : vector<8x64xf32>
    %cst_19 = arith.constant 1.000000e+00 : f32
    %36 = vector.broadcast %cst_19 : f32 to vector<8x64xf32>
    %37 = arith.addf %36, %35 : vector<8x64xf32>
    %38 = arith.divf %36, %37 : vector<8x64xf32>
    %39 = vector.extract_strided_slice %32 {offsets = [0, 64], sizes = [8, 10], strides = [1, 1]} : vector<8x74xf32> to vector<8x10xf32>
    %cst_20 = arith.constant 0.000000e+00 : f32
    %40 = vector.broadcast %cst_20 : f32 to vector<8x117xf32>
    %41 = tpu.concatenate %38, %6, %11, %39, %27, %40 in 1 : vector<8x64xf32>, vector<8x32xf32>, vector<8x32xf32>, vector<8x10xf32>, vector<8x1xf32>, vector<8x117xf32> -> vector<8x256xf32>
    %c0_21 = arith.constant 0 : index
    %c0_22 = arith.constant 0 : index
    %42 = vector.load %arg7[%c0_21, %c0_22] : memref<8x256xf32, #tpu.memory_space<vmem>>, vector<8x256xf32>
    tpu.vector_store %arg7[%c0_21, %c0_22], %41 {strides = array<i32>} : memref<8x256xf32, #tpu.memory_space<vmem>>, vector<8x256xf32>,
    return
  }
  func.func @transform_0(%arg0: i32) -> (i32, i32) {
    %c0_i32 = arith.constant 0 : i32
    %c0_i32_0 = arith.constant 0 : i32
    return %arg0, %c0_i32 : i32, i32
  }
  func.func @transform_1(%arg0: i32) -> (i32, i32) {
    %c0_i32 = arith.constant 0 : i32
    %c0_i32_0 = arith.constant 0 : i32
    return %arg0, %c0_i32 : i32, i32
  }
  func.func @transform_2(%arg0: i32) -> (i32, i32) {
    %c0_i32 = arith.constant 0 : i32
    %c0_i32_0 = arith.constant 0 : i32
    %c0_i32_1 = arith.constant 0 : i32
    return %c0_i32, %c0_i32_0 : i32, i32
  }
  func.func @transform_3(%arg0: i32) -> (i32, i32) {
    %c0_i32 = arith.constant 0 : i32
    %c0_i32_0 = arith.constant 0 : i32
    %c0_i32_1 = arith.constant 0 : i32
    return %c0_i32, %c0_i32_0 : i32, i32
  }
  func.func @transform_4(%arg0: i32) -> (i32, i32) {
    %c0_i32 = arith.constant 0 : i32
    %c0_i32_0 = arith.constant 0 : i32
    %c0_i32_1 = arith.constant 0 : i32
    return %c0_i32, %c0_i32_0 : i32, i32
  }
  func.func @transform_5(%arg0: i32) -> (i32, i32) {
    %c0_i32 = arith.constant 0 : i32
    %c0_i32_0 = arith.constant 0 : i32
    %c0_i32_1 = arith.constant 0 : i32
    return %c0_i32, %c0_i32_0 : i32, i32
  }
  func.func @transform_6(%arg0: i32) -> (i32, i32) {
    %c0_i32 = arith.constant 0 : i32
    %c0_i32_0 = arith.constant 0 : i32
    return %arg0, %c0_i32 : i32, i32
  }
}

</mosaic_0001>

<llo_original>
// kernel: _forward_impl.1
$region0: #{_forward_impl.1}
  #allocation0 [shape = 'u32[]', space=smem, size = 0x4, offset = 0x4, fixed_abs, tag = 'smem constant byte address 0x4 - core index']
  #allocation1 [shape = 'u32[144,128]{1,0:T(1,128)}', space=vmem, size = 0x12000, scoped, tag = 'internal scratch']
  %s0 = inlined_call_operand.hbm [shape: f32[8,64], index: 0, kind: input, shape index: {}]
  %s1 = inlined_call_operand.hbm [shape: f32[8,32], index: 1, kind: input, shape index: {}]
  %s2 = inlined_call_operand.hbm [shape: f32[64,64], index: 2, kind: input, shape index: {}]
  %s3 = inlined_call_operand.vmem [shape: f32[1,64], index: 3, kind: input, shape index: {}]
  %s4 = inlined_call_operand.hbm [shape: f32[32,74], index: 4, kind: input, shape index: {}]
  %s5 = inlined_call_operand.vmem [shape: f32[1,74], index: 5, kind: input, shape index: {}]
  %s6 = inlined_call_operand.vmem [shape: f32[8,256], index: 6, kind: output, shape index: {}]
  %s7 = sld [smem:[#allocation0]]
  $region50: #{_forward_impl.1} parent=0
    _
  %s9 = ssub.s32 1, %s7
  %s10 = scalar_select 0, %s9, %s7
  $region1: #{_forward_impl.1} parent=0
    #allocation2 [shape = 'u8[4096]{0}', space=vmem, size = 0x1000, scoped, tag = 'input window, operand 0, single buffered']
    #allocation3 [shape = 's32[1]{0}', space=sflag, size = 0x4, scoped, tag = 'scoped memory for _forward_impl.1']
    #allocation4 [shape = 'u8[4096]{0}', space=vmem, size = 0x1000, scoped, tag = 'input window, operand 1, single buffered']
    #allocation5 [shape = 's32[1]{0}', space=sflag, size = 0x4, scoped, tag = 'scoped memory for _forward_impl.1']
    #allocation6 [shape = 'u8[32768]{0}', space=vmem, size = 0x8000, scoped, tag = 'input window, operand 2, single buffered']
    #allocation7 [shape = 'u8[16384]{0}', space=vmem, size = 0x4000, scoped, tag = 'input window, operand 4, single buffered']
    #allocation8 [shape = 's32[1]{0}', space=sflag, size = 0x4, scoped, tag = 'scoped memory for _forward_impl.1']
    %11 = vsyncpa [#allocation3], 0
    %12 = vsyncpa [#allocation5], 0
    %13 = vsyncpa [#allocation8], 0
    // Predicated region
    $region2: #{_forward_impl.1} parent=1 // pred_check
      _
    $region3: #{_forward_impl.1} parent=1 // pred_check_branch
      %15 = sbr.rel (0) target = $region5
    $region4: #{_forward_impl.1} parent=1 // pred_region
      %s17 = ssub.s32 128, 128
      %18 = vsyncadd [#allocation3], %s17
      %s20 = sshll.u32 [#allocation2], 4
      %s21 = int_to_ptr.vmem [resolvable:$true] %s20
      %23 = dma.hbm_to_vmem [thread:$0]  %s0, 128, %s21, [#allocation3]
    $region5: #{_forward_impl.1} parent=1 // pred_fallthru
      _
    // Predicated region
    $region6: #{_forward_impl.1} parent=1 // pred_check
      _
    $region7: #{_forward_impl.1} parent=1 // pred_check_branch
      %25 = sbr.rel (0) target = $region9
    $region8: #{_forward_impl.1} parent=1 // pred_region
      %s27 = ssub.s32 128, 128
      %28 = vsyncadd [#allocation5], %s27
      %s30 = sshll.u32 [#allocation4], 4
      %s31 = int_to_ptr.vmem [resolvable:$true] %s30
      %33 = dma.hbm_to_vmem [thread:$0]  %s1, 128, %s31, [#allocation5]
    $region9: #{_forward_impl.1} parent=1 // pred_fallthru
      _
    // Predicated region
    $region10: #{_forward_impl.1} parent=1 // pred_check
      _
    $region11: #{_forward_impl.1} parent=1 // pred_check_branch
      %35 = sbr.rel (0) target = $region13
    $region12: #{_forward_impl.1} parent=1 // pred_region
      %s37 = ssub.s32 1024, 1024
      %38 = vsyncadd [#allocation5], %s37
      %s39 = sshll.u32 [#allocation6], 4
      %s40 = int_to_ptr.vmem [resolvable:$true] %s39
      %45 = dma.hbm_to_vmem [thread:$0]  %s2, 1024, %s40, [#allocation5], 128, 128, 8
    $region13: #{_forward_impl.1} parent=1 // pred_fallthru
      _
    // Predicated region
    $region14: #{_forward_impl.1} parent=1 // pred_check
      _
    $region15: #{_forward_impl.1} parent=1 // pred_check_branch
      %47 = sbr.rel (0) target = $region17
    $region16: #{_forward_impl.1} parent=1 // pred_region
      _
    $region17: #{_forward_impl.1} parent=1 // pred_fallthru
      _
    // Predicated region
    $region18: #{_forward_impl.1} parent=1 // pred_check
      _
    $region19: #{_forward_impl.1} parent=1 // pred_check_branch
      %49 = sbr.rel (0) target = $region21
    $region20: #{_forward_impl.1} parent=1 // pred_region
      %s51 = ssub.s32 512, 512
      %52 = vsyncadd [#allocation8], %s51
      %s53 = sshll.u32 [#allocation7], 4
      %s54 = int_to_ptr.vmem [resolvable:$true] %s53
      %59 = dma.hbm_to_vmem [thread:$0]  %s4, 512, %s54, [#allocation8], 128, 128, 8
    $region21: #{_forward_impl.1} parent=1 // pred_fallthru
      _
    // Predicated region
    $region22: #{_forward_impl.1} parent=1 // pred_check
      _
    $region23: #{_forward_impl.1} parent=1 // pred_check_branch
      %61 = sbr.rel (0) target = $region25
    $region24: #{_forward_impl.1} parent=1 // pred_region
      _
    $region25: #{_forward_impl.1} parent=1 // pred_fallthru
      _
    // Predicated region
    $region26: #{_forward_impl.1} parent=1 // pred_check
      _
    $region27: #{_forward_impl.1} parent=1 // pred_check_branch
      %63 = sbr.rel (0) target = $region29
    $region28: #{_forward_impl.1} parent=1 // pred_region
      %64 = dma.done [#allocation3], 128
    $region29: #{_forward_impl.1} parent=1 // pred_fallthru
      _
    // Predicated region
    $region30: #{_forward_impl.1} parent=1 // pred_check
      _
    $region31: #{_forward_impl.1} parent=1 // pred_check_branch
      %66 = sbr.rel (0) target = $region33
    $region32: #{_forward_impl.1} parent=1 // pred_region
      %67 = dma.done [#allocation5], 128
    $region33: #{_forward_impl.1} parent=1 // pred_fallthru
      _
    // Predicated region
    $region34: #{_forward_impl.1} parent=1 // pred_check
      _
    $region35: #{_forward_impl.1} parent=1 // pred_check_branch
      %69 = sbr.rel (0) target = $region37
    $region36: #{_forward_impl.1} parent=1 // pred_region
      %70 = dma.done [#allocation5], 1024
    $region37: #{_forward_impl.1} parent=1 // pred_fallthru
      _
    // Predicated region
    $region38: #{_forward_impl.1} parent=1 // pred_check
      _
    $region39: #{_forward_impl.1} parent=1 // pred_check_branch
      %72 = sbr.rel (0) target = $region41
    $region40: #{_forward_impl.1} parent=1 // pred_region
      %73 = dma.done [#allocation8], 512
    $region41: #{_forward_impl.1} parent=1 // pred_fallthru
      _
    %v74 = vld [vmem:[#allocation2] sm:$0xff]
    %v75 = vld [vmem:[#allocation6] sm:$0xff]
    %v76 = vld [vmem:[#allocation6 + $0x8] sm:$0xff]
    %v77 = vld [vmem:[#allocation6 + $0x10] sm:$0xff]
    %v78 = vld [vmem:[#allocation6 + $0x18] sm:$0xff]
    %v79 = vld [vmem:[#allocation6 + $0x20] sm:$0xff]
    %v80 = vld [vmem:[#allocation6 + $0x28] sm:$0xff]
    %v81 = vld [vmem:[#allocation6 + $0x30] sm:$0xff]
    %v82 = vld [vmem:[#allocation6 + $0x38] sm:$0xff]
    %v83 = vld [vmem:[%s3] sm:$0x1]
    %v85 = vlaneseq
    %v86 = vshrl.u32 %v85, 7
    %v87 = vsub.s32 0, %v86
    %v88 = vrot.slane %v83, %v87
    %vm90 = vcmask 523264
    %v92 = vsel %vm90, %v74, 0
    %94 = vmatprep.subr.mxu0 0.0
    %95 = vmatpush1.msra.mxu0 0.0
    %96 = vmatprep.subr.mxu0 0.0
    %97 = vmatpush1.msra.mxu0 0.0
    %98 = vmatprep.subr.mxu0 0.0
    %99 = vmatpush1.msra.mxu0 0.0
    %100 = vmatprep.subr.mxu0 0.0
    %101 = vmatpush1.msra.mxu0 0.0
    %102 = vmatprep.subr.mxu0 0.0
    %103 = vmatpush1.msra.mxu0 0.0
    %104 = vmatprep.subr.mxu0 0.0
    %105 = vmatpush1.msra.mxu0 0.0
    %106 = vmatprep.subr.mxu0 0.0
    %107 = vmatpush1.msra.mxu0 0.0
    %108 = vmatprep.subr.mxu0 0.0
    %109 = vmatpush1.msra.mxu0 0.0
    %110 = vmatprep.subr.mxu0 0.0
    %111 = vmatpush1.msra.mxu0 %v82
    %112 = vmatprep.subr.mxu0 0.0
    %113 = vmatpush1.msra.mxu0 %v81
    %114 = vmatprep.subr.mxu0 0.0
    %115 = vmatpush1.msra.mxu0 %v80
    %116 = vmatprep.subr.mxu0 0.0
    %117 = vmatpush1.msra.mxu0 %v79
    %118 = vmatprep.subr.mxu0 0.0
    %119 = vmatpush1.msra.mxu0 %v78
    %120 = vmatprep.subr.mxu0 0.0
    %121 = vmatpush1.msra.mxu0 %v77
    %122 = vmatprep.subr.mxu0 0.0
    %123 = vmatpush1.msra.mxu0 %v76
    %124 = vmatprep.subr.mxu0 0.0
    %125 = vmatpush1.msra.mxu0 %v75
    %126 = vmatprep.subr.mxu0 0.0
    %127 = vmatpush2.msra.mxu0 0.0
    %128 = vmatprep.subr.mxu0 0.0
    %129 = vmatpush2.msra.mxu0 0.0
    %130 = vmatprep.subr.mxu0 0.0
    %131 = vmatpush2.msra.mxu0 0.0
    %132 = vmatprep.subr.mxu0 0.0
    %133 = vmatpush2.msra.mxu0 0.0
    %134 = vmatprep.subr.mxu0 0.0
    %135 = vmatpush2.msra.mxu0 0.0
    %136 = vmatprep.subr.mxu0 0.0
    %137 = vmatpush2.msra.mxu0 0.0
    %138 = vmatprep.subr.mxu0 0.0
    %139 = vmatpush2.msra.mxu0 0.0
    %140 = vmatprep.subr.mxu0 0.0
    %141 = vmatpush2.msra.mxu0 0.0
    %142 = vmatprep.subr.mxu0 0.0
    %143 = vmatpush2.msra.mxu0 0.0
    %144 = vmatprep.subr.mxu0 0.0
    %145 = vmatpush2.msra.mxu0 0.0
    %146 = vmatprep.subr.mxu0 0.0
    %147 = vmatpush2.msra.mxu0 0.0
    %148 = vmatprep.subr.mxu0 0.0
    %149 = vmatpush2.msra.mxu0 0.0
    %150 = vmatprep.subr.mxu0 0.0
    %151 = vmatpush2.msra.mxu0 0.0
    %152 = vmatprep.subr.mxu0 0.0
    %153 = vmatpush2.msra.mxu0 0.0
    %154 = vmatprep.subr.mxu0 0.0
    %155 = vmatpush2.msra.mxu0 0.0
    %156 = vmatprep.subr.mxu0 0.0
    %157 = vmatpush2.msra.mxu0 0.0
    %158 = vmatprep.mubr.f32.mxu0 0.0
    %159 = vmatmul.mubr.f32.gmra.mxu0 %v92
    %v160 = vpop.f32.mrf.mxu0
    %v161 = vadd.f32 %v88, %v160
    %v162 = vpop.f32.mrf.mxu0
    %163 = vdwg.mxu0
    %v164 = vmax.f32 %v161, -10.0
    %v165 = vmin.f32 %v164, 2.0
    %167 = vrot.lane.b32.xlu0 %v165, 96
    %v168 = vpop.permute.xlu0 %167
    %vm170 = vcmask 261120
    %v171 = vsel %vm170, %v168, 0.0
    %172 = vadd.xlane.f32.xlu0 %v171
    %v173 = vpop.xlane.xlu0 %172
    %v174 = vsub.f32 0.0, %v173
    %v175 = vld [vmem:[#allocation4] sm:$0xff]
    %v176 = vmul.f32 %v165, 1.442695
    %v177 = vpow.pop %v176
    %179 = vrot.lane.b32.xlu0 %v175, 32
    %v180 = vpop.permute.xlu0 %179
    %v182 = vmul.f32 %v177, %v180
    %184 = vrot.lane.b32.xlu0 %v182, 96
    %v185 = vpop.permute.xlu0 %184
    %v187 = vadd.f32 %v161, %v185
    %v188 = vsub.f32 %v174, 29.406033
    %v189 = vmul.f32 %v175, %v175
    %v190 = vsel %vm170, %v189, 0.0
    %191 = vadd.xlane.f32.xlu0 %v190
    %v192 = vpop.xlane.xlu0 %191
    %v193 = vmul.f32 %v192, 0.5
    %v194 = vsub.f32 %v188, %v193
    %v195 = vld [vmem:[#allocation7] sm:$0xff]
    %v196 = vld [vmem:[#allocation7 + $0x8] sm:$0xff]
    %v197 = vld [vmem:[#allocation7 + $0x10] sm:$0xff]
    %v198 = vld [vmem:[#allocation7 + $0x18] sm:$0xff]
    %v199 = vld [vmem:[%s5] sm:$0x1]
    %v201 = vlaneseq
    %v202 = vshrl.u32 %v201, 7
    %v203 = vsub.s32 0, %v202
    %v204 = vrot.slane %v199, %v203
    %v207 = vsel %vm170, %v187, 0
    %209 = vmatprep.subr.mxu0 0.0
    %210 = vmatpush1.msra.mxu0 0.0
    %211 = vmatprep.subr.mxu0 0.0
    %212 = vmatpush1.msra.mxu0 0.0
    %213 = vmatprep.subr.mxu0 0.0
    %214 = vmatpush1.msra.mxu0 0.0
    %215 = vmatprep.subr.mxu0 0.0
    %216 = vmatpush1.msra.mxu0 0.0
    %217 = vmatprep.subr.mxu0 0.0
    %218 = vmatpush1.msra.mxu0 0.0
    %219 = vmatprep.subr.mxu0 0.0
    %220 = vmatpush1.msra.mxu0 0.0
    %221 = vmatprep.subr.mxu0 0.0
    %222 = vmatpush1.msra.mxu0 0.0
    %223 = vmatprep.subr.mxu0 0.0
    %224 = vmatpush1.msra.mxu0 0.0
    %225 = vmatprep.subr.mxu0 0.0
    %226 = vmatpush1.msra.mxu0 0.0
    %227 = vmatprep.subr.mxu0 0.0
    %228 = vmatpush1.msra.mxu0 0.0
    %229 = vmatprep.subr.mxu0 0.0
    %230 = vmatpush1.msra.mxu0 0.0
    %231 = vmatprep.subr.mxu0 0.0
    %232 = vmatpush1.msra.mxu0 0.0
    %233 = vmatprep.subr.mxu0 0.0
    %234 = vmatpush1.msra.mxu0 %v198
    %235 = vmatprep.subr.mxu0 0.0
    %236 = vmatpush1.msra.mxu0 %v197
    %237 = vmatprep.subr.mxu0 0.0
    %238 = vmatpush1.msra.mxu0 %v196
    %239 = vmatprep.subr.mxu0 0.0
    %240 = vmatpush1.msra.mxu0 %v195
    %241 = vmatprep.subr.mxu0 0.0
    %242 = vmatpush2.msra.mxu0 0.0
    %243 = vmatprep.subr.mxu0 0.0
    %244 = vmatpush2.msra.mxu0 0.0
    %245 = vmatprep.subr.mxu0 0.0
    %246 = vmatpush2.msra.mxu0 0.0
    %247 = vmatprep.subr.mxu0 0.0
    %248 = vmatpush2.msra.mxu0 0.0
    %249 = vmatprep.subr.mxu0 0.0
    %250 = vmatpush2.msra.mxu0 0.0
    %251 = vmatprep.subr.mxu0 0.0
    %252 = vmatpush2.msra.mxu0 0.0
    %253 = vmatprep.subr.mxu0 0.0
    %254 = vmatpush2.msra.mxu0 0.0
    %255 = vmatprep.subr.mxu0 0.0
    %256 = vmatpush2.msra.mxu0 0.0
    %257 = vmatprep.subr.mxu0 0.0
    %258 = vmatpush2.msra.mxu0 0.0
    %259 = vmatprep.subr.mxu0 0.0
    %260 = vmatpush2.msra.mxu0 0.0
    %261 = vmatprep.subr.mxu0 0.0
    %262 = vmatpush2.msra.mxu0 0.0
    %263 = vmatprep.subr.mxu0 0.0
    %264 = vmatpush2.msra.mxu0 0.0
    %265 = vmatprep.subr.mxu0 0.0
    %266 = vmatpush2.msra.mxu0 0.0
    %267 = vmatprep.subr.mxu0 0.0
    %268 = vmatpush2.msra.mxu0 0.0
    %269 = vmatprep.subr.mxu0 0.0
    %270 = vmatpush2.msra.mxu0 0.0
    %271 = vmatprep.subr.mxu0 0.0
    %272 = vmatpush2.msra.mxu0 0.0
    %273 = vmatprep.mubr.f32.mxu0 0.0
    %274 = vmatmul.mubr.f32.gmra.mxu0 %v207
    %v275 = vpop.f32.mrf.mxu0
    %v276 = vadd.f32 %v204, %v275
    %v277 = vpop.f32.mrf.mxu0
    %278 = vdwg.mxu0
    %v279 = vxor.u32 %v276, 2147483648
    %v280 = vmul.f32 %v279, 1.442695
    %v281 = vpow.pop %v280
    %v282 = vadd.f32 %v281, 1.0
    %v283 = vrcp.pop %v282
    %v284 = vmul.f32 1.0, %v283
    %286 = vrot.lane.b32.xlu0 %v161, 64
    %v287 = vpop.permute.xlu0 %286
    %289 = vrot.lane.b32.xlu0 %v165, 64
    %v290 = vpop.permute.xlu0 %289
    %293 = vrot.lane.b32.xlu0 %v276, 64
    %v294 = vpop.permute.xlu0 %293
    %v296 = vsel %vm90, %v284, %v287
    %vm297 = vcmask 785408
    %v298 = vsel %vm297, %v296, %v290
    %vm299 = vcmask 80896
    %v300 = vsel %vm299, %v294, %v194
    %vm301 = vcmask 89088
    %v302 = vsel %vm301, %v300, 0.0
    %303 = vst [vmem:[%s6] sm:$0xff] %v298
    %304 = vst [vmem:[%s6 + $0x8] sm:$0xff] %v302
    // Predicated region
    $region42: #{_forward_impl.1} parent=1 // pred_check
      _
    $region43: #{_forward_impl.1} parent=1 // pred_check_branch
      %306 = sbr.rel (0) target = $region45
    $region44: #{_forward_impl.1} parent=1 // pred_region
      _
    $region45: #{_forward_impl.1} parent=1 // pred_fallthru
      _
    // Predicated region
    $region46: #{_forward_impl.1} parent=1 // pred_check
      _
    $region47: #{_forward_impl.1} parent=1 // pred_check_branch
      %308 = sbr.rel (0) target = $region49
    $region48: #{_forward_impl.1} parent=1 // pred_region
      _
    $region49: #{_forward_impl.1} parent=1 // pred_fallthru
      _
    %309 = vsyncpa [#allocation3], 1
    %310 = vsyncpa [#allocation5], 1
    %311 = vsyncpa [#allocation8], 1

</llo_original>
